<compile_context>
chip_gen: v5e
topology: v5e:2x2
jax: 0.10.0
libtpu: 0.0.40
codegen_flags: <defaults>
</compile_context>

<pallas_src>
import functools

import jax
import jax.numpy as jnp
from jax import lax
from jax.experimental import pallas as pl
from jax.experimental.pallas import tpu as pltpu

CONTROL = 1  # mirrors `control = 1` in the PyTorch module


def _lstm_chunk_kernel(len_ref, gin_ref, whh_ref, ctx_ref, ht_ref, ct_ref,
                       h_s, c_s):
    """One grid step == one chunk of TT timesteps of the LSTM recurrence.

    gin_ref: (TT, B, 4H) precomputed x@W_ih + b (gate order [i, f, o, g])
    whh_ref: (H, 4H)     recurrent weights (same gate order)
    len_ref: (B, 1)      sequence lengths
    """
    chunk = pl.program_id(0)
    TT = gin_ref.shape[0]
    H = whh_ref.shape[0]

    @pl.when(chunk == 0)
    def _():
        h_s[...] = jnp.zeros_like(h_s)
        c_s[...] = jnp.zeros_like(c_s)

    lengths = len_ref[...]            # (B, 1) int32
    t_base = chunk * TT
    whh = whh_ref[...]                # hoist the weight load out of the loop

    def step(s, carry):
        h, c = carry
        gates = gin_ref[s] + jnp.dot(h, whh,
                                     preferred_element_type=jnp.float32)
        # gate layout [ i | f | o | g ]: one sigmoid block + one tanh block
        sig = jax.nn.sigmoid(gates[:, :3 * H])
        g_g = jnp.tanh(gates[:, 3 * H:])
        i_g = sig[:, 0 * H:1 * H]
        f_g = sig[:, 1 * H:2 * H]
        o_g = sig[:, 2 * H:3 * H]

        c_new = f_g * c + i_g * g_g
        h_new = o_g * jnp.tanh(c_new)

        # packed-sequence semantics: freeze state past length, zero padded ctx
        mask = (t_base + s) < lengths                     # (B, 1) bool
        ctx_ref[s] = jnp.where(mask, h_new, 0.0)
        return (jnp.where(mask, h_new, h), jnp.where(mask, c_new, c))

    h_fin, c_fin = lax.fori_loop(0, TT, step, (h_s[...], c_s[...]),
                                 unroll=True)
    h_s[...] = h_fin
    c_s[...] = c_fin

    @pl.when(chunk == pl.num_programs(0) - 1)
    def _():
        ht_ref[...] = h_fin
        ct_ref[...] = c_fin


@functools.partial(jax.jit, static_argnames=("tt",))
def encoder_lstm_forward(inputs, lengths, kparams, *, tt=8):
    """inputs: (B, T) int32 vocab ids; lengths: (B,) int32 (sorted desc)."""
    emb_table = kparams["embedding"]          # (V, E)
    w_ih_t = kparams["w_ih_t"]                # (E, 4H)  gate order [i,f,o,g]
    w_hh_t = kparams["w_hh_t"]                # (H, 4H)
    b_gates = kparams["b_gates"]              # (1, 4H)  (= b_ih + b_hh)
    w_e2d_t = kparams["w_e2d_t"]              # (H, H)
    b_e2d = kparams["b_e2d"]                  # (1, H)

    B, T = inputs.shape
    E = emb_table.shape[1]
    H = w_hh_t.shape[0]

    # Embedding lookup (plain JAX gather). Dropout == identity (eval).
    embeds = emb_table[inputs]                       # (B, T, E)
    embeds_tm = jnp.transpose(embeds, (1, 0, 2))     # (T, B, E) time-major

    # Hoisted input projection: one big MXU matmul over all timesteps.
    gates_in = (embeds_tm.reshape(T * B, E) @ w_ih_t
                + b_gates).reshape(T, B, 4 * H)      # (T, B, 4H)

    # Chunk the time axis; pad T up to a multiple of TT (padded steps are
    # masked out inside the kernel because t >= length for every batch row).
    TT = min(tt, T)
    n_chunks = pl.cdiv(T, TT)
    T_pad = n_chunks * TT
    if T_pad != T:
        gates_in = jnp.pad(gates_in, ((0, T_pad - T), (0, 0), (0, 0)))

    lengths2d = lengths.reshape(B, 1).astype(jnp.int32)

    grid_spec = pltpu.PrefetchScalarGridSpec(
        num_scalar_prefetch=0,
        grid=(n_chunks,),
        in_specs=[
            pl.BlockSpec((B, 1), lambda i: (0, 0)),            # lengths
            pl.BlockSpec((TT, B, 4 * H), lambda i: (i, 0, 0)),  # gate inputs
            pl.BlockSpec((H, 4 * H), lambda i: (0, 0)),        # W_hh^T
        ],
        out_specs=[
            pl.BlockSpec((TT, B, H), lambda i: (i, 0, 0)),     # ctx (T,B,H)
            pl.BlockSpec((B, H), lambda i: (0, 0)),            # h_T
            pl.BlockSpec((B, H), lambda i: (0, 0)),            # c_T
        ],
        scratch_shapes=[
            pltpu.VMEM((B, H), jnp.float32),                   # h state
            pltpu.VMEM((B, H), jnp.float32),                   # c state
        ],
    )

    ctx_tm, h_t, c_t = pl.pallas_call(
        _lstm_chunk_kernel,
        grid_spec=grid_spec,
        out_shape=(
            jax.ShapeDtypeStruct((T_pad, B, H), jnp.float32),
            jax.ShapeDtypeStruct((B, H), jnp.float32),
            jax.ShapeDtypeStruct((B, H), jnp.float32),
        ),
        compiler_params=pltpu.CompilerParams(
            dimension_semantics=("arbitrary",)),   # time is inherently serial
    )(lengths2d, gates_in, w_hh_t)

    ctx = jnp.transpose(ctx_tm[:T], (1, 0, 2))     # (B, T, H) batch_first
    # Final projection runs once -> keep it out of the kernel (frees VMEM).
    decoder_init = jnp.tanh(h_t @ w_e2d_t + b_e2d)
    return ctx, decoder_init, c_t


def init_params(key, vocab_size, embedding_size, hidden_size_eff, padding_idx):
    """Raw parameters in PyTorch layout (gate order [i, f, g, o])."""
    ks = jax.random.split(key, 6)
    scale = 0.1
    H = hidden_size_eff
    emb = scale * jax.random.normal(ks[0], (vocab_size, embedding_size),
                                    jnp.float32)
    emb = emb.at[padding_idx].set(0.0)             # nn.Embedding padding_idx
    w_ih = scale * jax.random.normal(ks[1], (4 * H, embedding_size), jnp.float32)
    w_hh = scale * jax.random.normal(ks[2], (4 * H, H), jnp.float32)
    b_ih = scale * jax.random.normal(ks[3], (4 * H,), jnp.float32)
    b_hh = scale * jax.random.normal(ks[4], (4 * H,), jnp.float32)
    w_e2d = scale * jax.random.normal(ks[5], (H, H), jnp.float32)
    b_e2d = jnp.zeros((H,), jnp.float32)
    return {"embedding": emb, "w_ih": w_ih, "w_hh": w_hh, "b_ih": b_ih,
            "b_hh": b_hh, "w_e2d": w_e2d, "b_e2d": b_e2d}


def prepare_kernel_params(raw):
    """Transpose weights and permute gate columns [i,f,g,o] -> [i,f,o,g]."""
    H4 = raw["w_ih"].shape[0]
    H = H4 // 4
    perm = jnp.concatenate([jnp.arange(0 * H, 1 * H),     # i
                            jnp.arange(1 * H, 2 * H),     # f
                            jnp.arange(3 * H, 4 * H),     # o
                            jnp.arange(2 * H, 3 * H)])    # g
    return {
        "embedding": raw["embedding"],
        "w_ih_t": raw["w_ih"].T[:, perm],                       # (E, 4H)
        "w_hh_t": raw["w_hh"].T[:, perm],                       # (H, 4H)
        "b_gates": (raw["b_ih"] + raw["b_hh"])[perm][None, :],  # (1, 4H)
        "w_e2d_t": raw["w_e2d"].T,                              # (H, H)
        "b_e2d": raw["b_e2d"][None, :],                         # (1, H)
    }


def _reference(inputs, lengths, raw):
    """Pure-JAX reference (PyTorch gate order, per-timestep matmuls)."""
    emb = raw["embedding"][inputs]                 # (B, T, E)
    B, T, _ = emb.shape
    H = raw["w_hh"].shape[1]
    w_ih_t = raw["w_ih"].T
    w_hh_t = raw["w_hh"].T
    b = (raw["b_ih"] + raw["b_hh"])[None, :]
    h = jnp.zeros((B, H), jnp.float32)
    c = jnp.zeros((B, H), jnp.float32)
    ctx = []
    for t in range(T):
        x = emb[:, t, :]
        gates = x @ w_ih_t + h @ w_hh_t + b
        i = jax.nn.sigmoid(gates[:, 0 * H:1 * H])
        f = jax.nn.sigmoid(gates[:, 1 * H:2 * H])
        g = jnp.tanh(gates[:, 2 * H:3 * H])
        o = jax.nn.sigmoid(gates[:, 3 * H:4 * H])
        c_new = f * c + i * g
        h_new = o * jnp.tanh(c_new)
        m = (t < lengths).astype(jnp.float32)[:, None]
        h = m * h_new + (1 - m) * h
        c = m * c_new + (1 - m) * c
        ctx.append(m * h_new)
    ctx = jnp.stack(ctx, axis=1)
    dec = jnp.tanh(h @ raw["w_e2d"].T + raw["b_e2d"][None, :])
    return ctx, dec, c


if __name__ == "__main__":
    # Small shapes: vocab=100, embed=32, hidden=31 (+control -> 32), B=2, T=8
    VOCAB, E, HID, PAD = 100, 32, 31, 0
    B, T = 2, 8
    H = HID + CONTROL        # module adds `control` to hidden_size

    key = jax.random.PRNGKey(0)
    k_param, k_inp = jax.random.split(key)
    raw_params = init_params(k_param, VOCAB, E, H, PAD)
    kparams = prepare_kernel_params(raw_params)

    lengths = jnp.array([T, 5], dtype=jnp.int32)   # sorted descending
    inputs = jax.random.randint(k_inp, (B, T), 1, VOCAB, dtype=jnp.int32)
    pos = jnp.arange(T)[None, :]
    inputs = jnp.where(pos < lengths[:, None], inputs, PAD)

    ctx, dec_init, c_t = encoder_lstm_forward(inputs, lengths, kparams, tt=8)
    jax.block_until_ready((ctx, dec_init, c_t))

    ctx_r, dec_r, c_r = _reference(inputs, lengths, raw_params)
    assert jnp.allclose(ctx, ctx_r, atol=1e-4), "ctx mismatch"
    assert jnp.allclose(dec_init, dec_r, atol=1e-4), "decoder_init mismatch"
    assert jnp.allclose(c_t, c_r, atol=1e-4), "c_t mismatch"

    # TODO(synk): dropout layers are identity here (eval mode); training-mode
    # dropout would need pltpu.prng_* inside the kernel.
    print("KERNEL_OK")
</pallas_src>

<mosaic_0001>
module attributes {stable_mosaic.version = 11 : i64} {
  func.func @_lstm_chunk_kernel(%arg0: i32, %arg1: memref<2x1xi32, #tpu.memory_space<vmem>>, %arg2: memref<8x2x128xf32, #tpu.memory_space<vmem>>, %arg3: memref<32x128xf32, #tpu.memory_space<vmem>>, %arg4: memref<8x2x32xf32, #tpu.memory_space<vmem>>, %arg5: memref<2x32xf32, #tpu.memory_space<vmem>>, %arg6: memref<2x32xf32, #tpu.memory_space<vmem>>, %arg7: memref<2x32xf32, #tpu.memory_space<vmem>>, %arg8: memref<2x32xf32, #tpu.memory_space<vmem>>) attributes {dimension_semantics = [#tpu.dimension_semantics<arbitrary>], iteration_bounds = array<i64: 1>, scalar_prefetch = 0 : i64, scratch_operands = 2 : i64, tpu.core_type = #tpu.core_type<tc>, window_params = [{pipeline_mode = #tpu.pipeline_mode<synchronous>, transform_indices = @transform_0, window_bounds = array<i64: 2, 1>}, {transform_indices = @transform_1, window_bounds = array<i64: 8, 2, 128>}, {pipeline_mode = #tpu.pipeline_mode<synchronous>, transform_indices = @transform_2, window_bounds = array<i64: 32, 128>}, {transform_indices = @transform_3, window_bounds = array<i64: 8, 2, 32>}, {pipeline_mode = #tpu.pipeline_mode<synchronous>, transform_indices = @transform_4, window_bounds = array<i64: 2, 32>}, {pipeline_mode = #tpu.pipeline_mode<synchronous>, transform_indices = @transform_5, window_bounds = array<i64: 2, 32>}]} {
    %c0_i32 = arith.constant 0 : i32
    %0 = arith.cmpi eq, %arg0, %c0_i32 : i32
    %1 = arith.extui %0 : i1 to i32
    %c0_i32_0 = arith.constant 0 : i32
    %2 = arith.cmpi ne, %1, %c0_i32_0 : i32
    scf.if %2 {
      %cst_71 = arith.constant 0.000000e+00 : f32
      %317 = vector.broadcast %cst_71 : f32 to vector<2x32xf32>
      %c0_72 = arith.constant 0 : index
      %c0_73 = arith.constant 0 : index
      %318 = vector.load %arg7[%c0_72, %c0_73] : memref<2x32xf32, #tpu.memory_space<vmem>>, vector<2x32xf32>
      tpu.vector_store %arg7[%c0_72, %c0_73], %317 {strides = array<i32>} : memref<2x32xf32, #tpu.memory_space<vmem>>, vector<2x32xf32>,
      %cst_74 = arith.constant 0.000000e+00 : f32
      %319 = vector.broadcast %cst_74 : f32 to vector<2x32xf32>
      %c0_75 = arith.constant 0 : index
      %c0_76 = arith.constant 0 : index
      %320 = vector.load %arg8[%c0_75, %c0_76] : memref<2x32xf32, #tpu.memory_space<vmem>>, vector<2x32xf32>
      tpu.vector_store %arg8[%c0_75, %c0_76], %319 {strides = array<i32>} : memref<2x32xf32, #tpu.memory_space<vmem>>, vector<2x32xf32>,
    } else {
    }
    %c0 = arith.constant 0 : index
    %c0_1 = arith.constant 0 : index
    %3 = vector.load %arg1[%c0, %c0_1] : memref<2x1xi32, #tpu.memory_space<vmem>>, vector<2x1xi32>
    %c8_i32 = arith.constant 8 : i32
    %4 = arith.muli %arg0, %c8_i32 : i32
    %c0_2 = arith.constant 0 : index
    %c0_3 = arith.constant 0 : index
    %5 = vector.load %arg3[%c0_2, %c0_3] : memref<32x128xf32, #tpu.memory_space<vmem>>, vector<32x128xf32>
    %c0_4 = arith.constant 0 : index
    %c0_5 = arith.constant 0 : index
    %6 = vector.load %arg7[%c0_4, %c0_5] : memref<2x32xf32, #tpu.memory_space<vmem>>, vector<2x32xf32>
    %c0_6 = arith.constant 0 : index
    %c0_7 = arith.constant 0 : index
    %7 = vector.load %arg8[%c0_6, %c0_7] : memref<2x32xf32, #tpu.memory_space<vmem>>, vector<2x32xf32>
    %c0_i32_8 = arith.constant 0 : i32
    %8 = arith.index_cast %c0_i32_8 : i32 to index
    %c0_9 = arith.constant 0 : index
    %c0_10 = arith.constant 0 : index
    %9 = vector.load %arg2[%8, %c0_9, %c0_10] : memref<8x2x128xf32, #tpu.memory_space<vmem>>, vector<1x2x128xf32>
    %10 = vector.shape_cast %9 : vector<1x2x128xf32> to vector<2x128xf32>
    %cst = arith.constant dense<0.000000e+00> : vector<2x128xf32>
    %11 = tpu.matmul %6, %5, %cst {dimension_numbers = #tpu.dot_dimension_numbers<[1], [0], [0], [1], [0, 0, 1, 1], [], []>} : vector<2x32xf32>, vector<32x128xf32>, vector<2x128xf32> -> vector<2x128xf32>
    %12 = arith.addf %10, %11 : vector<2x128xf32>
    %13 = vector.extract_strided_slice %12 {offsets = [0, 0], sizes = [2, 96], strides = [1, 1]} : vector<2x128xf32> to vector<2x96xf32>
    %14 = arith.negf %13 : vector<2x96xf32>
    %15 = math.exp %14 : vector<2x96xf32>
    %cst_11 = arith.constant 1.000000e+00 : f32
    %16 = vector.broadcast %cst_11 : f32 to vector<2x96xf32>
    %17 = arith.addf %16, %15 : vector<2x96xf32>
    %18 = arith.divf %16, %17 : vector<2x96xf32>
    %19 = vector.extract_strided_slice %12 {offsets = [0, 96], sizes = [2, 32], strides = [1, 1]} : vector<2x128xf32> to vector<2x32xf32>
    %20 = math.tanh %19 : vector<2x32xf32>
    %21 = vector.extract_strided_slice %18 {offsets = [0, 0], sizes = [2, 32], strides = [1, 1]} : vector<2x96xf32> to vector<2x32xf32>
    %22 = vector.extract_strided_slice %18 {offsets = [0, 32], sizes = [2, 32], strides = [1, 1]} : vector<2x96xf32> to vector<2x32xf32>
    %23 = vector.extract_strided_slice %18 {offsets = [0, 64], sizes = [2, 32], strides = [1, 1]} : vector<2x96xf32> to vector<2x32xf32>
    %24 = arith.mulf %22, %7 : vector<2x32xf32>
    %25 = arith.mulf %21, %20 : vector<2x32xf32>
    %26 = arith.addf %24, %25 : vector<2x32xf32>
    %27 = math.tanh %26 : vector<2x32xf32>
    %28 = arith.mulf %23, %27 : vector<2x32xf32>
    %29 = arith.addi %4, %c0_i32_8 : i32
    %30 = vector.broadcast %29 : i32 to vector<2x1xi32>
    %31 = arith.cmpi slt, %30, %3 : vector<2x1xi32>
    %cst_12 = arith.constant 0.000000e+00 : f32
    %32 = vector.shape_cast %31 : vector<2x1xi1> to vector<2x1xi1>
    %33 = vector.broadcast %32 : vector<2x1xi1> to vector<2x32xi1>
    %34 = vector.broadcast %cst_12 : f32 to vector<2x32xf32>
    %35 = arith.select %33, %28, %34 : vector<2x32xi1>, vector<2x32xf32>
    %36 = arith.index_cast %c0_i32_8 : i32 to index
    %c0_13 = arith.constant 0 : index
    %c0_14 = arith.constant 0 : index
    %37 = vector.load %arg4[%36, %c0_13, %c0_14] : memref<8x2x32xf32, #tpu.memory_space<vmem>>, vector<1x2x32xf32>
    %38 = vector.shape_cast %37 : vector<1x2x32xf32> to vector<2x32xf32>
    %39 = vector.shape_cast %35 : vector<2x32xf32> to vector<1x2x32xf32>
    tpu.vector_store %arg4[%36, %c0_13, %c0_14], %39 {strides = array<i32>} : memref<8x2x32xf32, #tpu.memory_space<vmem>>, vector<1x2x32xf32>,
    %40 = vector.shape_cast %31 : vector<2x1xi1> to vector<2x1xi1>
    %41 = vector.broadcast %40 : vector<2x1xi1> to vector<2x32xi1>
    %42 = arith.select %41, %28, %6 : vector<2x32xi1>, vector<2x32xf32>
    %43 = vector.shape_cast %31 : vector<2x1xi1> to vector<2x1xi1>
    %44 = vector.broadcast %43 : vector<2x1xi1> to vector<2x32xi1>
    %45 = arith.select %44, %26, %7 : vector<2x32xi1>, vector<2x32xf32>
    %c1_i32 = arith.constant 1 : i32
    %46 = arith.index_cast %c1_i32 : i32 to index
    %c0_15 = arith.constant 0 : index
    %c0_16 = arith.constant 0 : index
    %47 = vector.load %arg2[%46, %c0_15, %c0_16] : memref<8x2x128xf32, #tpu.memory_space<vmem>>, vector<1x2x128xf32>
    %48 = vector.shape_cast %47 : vector<1x2x128xf32> to vector<2x128xf32>
    %cst_17 = arith.constant dense<0.000000e+00> : vector<2x128xf32>
    %49 = tpu.matmul %42, %5, %cst_17 {dimension_numbers = #tpu.dot_dimension_numbers<[1], [0], [0], [1], [0, 0, 1, 1], [], []>} : vector<2x32xf32>, vector<32x128xf32>, vector<2x128xf32> -> vector<2x128xf32>
    %50 = arith.addf %48, %49 : vector<2x128xf32>
    %51 = vector.extract_strided_slice %50 {offsets = [0, 0], sizes = [2, 96], strides = [1, 1]} : vector<2x128xf32> to vector<2x96xf32>
    %52 = arith.negf %51 : vector<2x96xf32>
    %53 = math.exp %52 : vector<2x96xf32>
    %cst_18 = arith.constant 1.000000e+00 : f32
    %54 = vector.broadcast %cst_18 : f32 to vector<2x96xf32>
    %55 = arith.addf %54, %53 : vector<2x96xf32>
    %56 = arith.divf %54, %55 : vector<2x96xf32>
    %57 = vector.extract_strided_slice %50 {offsets = [0, 96], sizes = [2, 32], strides = [1, 1]} : vector<2x128xf32> to vector<2x32xf32>
    %58 = math.tanh %57 : vector<2x32xf32>
    %59 = vector.extract_strided_slice %56 {offsets = [0, 0], sizes = [2, 32], strides = [1, 1]} : vector<2x96xf32> to vector<2x32xf32>
    %60 = vector.extract_strided_slice %56 {offsets = [0, 32], sizes = [2, 32], strides = [1, 1]} : vector<2x96xf32> to vector<2x32xf32>
    %61 = vector.extract_strided_slice %56 {offsets = [0, 64], sizes = [2, 32], strides = [1, 1]} : vector<2x96xf32> to vector<2x32xf32>
    %62 = arith.mulf %60, %45 : vector<2x32xf32>
    %63 = arith.mulf %59, %58 : vector<2x32xf32>
    %64 = arith.addf %62, %63 : vector<2x32xf32>
    %65 = math.tanh %64 : vector<2x32xf32>
    %66 = arith.mulf %61, %65 : vector<2x32xf32>
    %67 = arith.addi %4, %c1_i32 : i32
    %68 = vector.broadcast %67 : i32 to vector<2x1xi32>
    %69 = arith.cmpi slt, %68, %3 : vector<2x1xi32>
    %cst_19 = arith.constant 0.000000e+00 : f32
    %70 = vector.shape_cast %69 : vector<2x1xi1> to vector<2x1xi1>
    %71 = vector.broadcast %70 : vector<2x1xi1> to vector<2x32xi1>
    %72 = vector.broadcast %cst_19 : f32 to vector<2x32xf32>
    %73 = arith.select %71, %66, %72 : vector<2x32xi1>, vector<2x32xf32>
    %74 = arith.index_cast %c1_i32 : i32 to index
    %c0_20 = arith.constant 0 : index
    %c0_21 = arith.constant 0 : index
    %75 = vector.load %arg4[%74, %c0_20, %c0_21] : memref<8x2x32xf32, #tpu.memory_space<vmem>>, vector<1x2x32xf32>
    %76 = vector.shape_cast %75 : vector<1x2x32xf32> to vector<2x32xf32>
    %77 = vector.shape_cast %73 : vector<2x32xf32> to vector<1x2x32xf32>
    tpu.vector_store %arg4[%74, %c0_20, %c0_21], %77 {strides = array<i32>} : memref<8x2x32xf32, #tpu.memory_space<vmem>>, vector<1x2x32xf32>,
    %78 = vector.shape_cast %69 : vector<2x1xi1> to vector<2x1xi1>
    %79 = vector.broadcast %78 : vector<2x1xi1> to vector<2x32xi1>
    %80 = arith.select %79, %66, %42 : vector<2x32xi1>, vector<2x32xf32>
    %81 = vector.shape_cast %69 : vector<2x1xi1> to vector<2x1xi1>
    %82 = vector.broadcast %81 : vector<2x1xi1> to vector<2x32xi1>
    %83 = arith.select %82, %64, %45 : vector<2x32xi1>, vector<2x32xf32>
    %c2_i32 = arith.constant 2 : i32
    %84 = arith.index_cast %c2_i32 : i32 to index
    %c0_22 = arith.constant 0 : index
    %c0_23 = arith.constant 0 : index
    %85 = vector.load %arg2[%84, %c0_22, %c0_23] : memref<8x2x128xf32, #tpu.memory_space<vmem>>, vector<1x2x128xf32>
    %86 = vector.shape_cast %85 : vector<1x2x128xf32> to vector<2x128xf32>
    %cst_24 = arith.constant dense<0.000000e+00> : vector<2x128xf32>
    %87 = tpu.matmul %80, %5, %cst_24 {dimension_numbers = #tpu.dot_dimension_numbers<[1], [0], [0], [1], [0, 0, 1, 1], [], []>} : vector<2x32xf32>, vector<32x128xf32>, vector<2x128xf32> -> vector<2x128xf32>
    %88 = arith.addf %86, %87 : vector<2x128xf32>
    %89 = vector.extract_strided_slice %88 {offsets = [0, 0], sizes = [2, 96], strides = [1, 1]} : vector<2x128xf32> to vector<2x96xf32>
    %90 = arith.negf %89 : vector<2x96xf32>
    %91 = math.exp %90 : vector<2x96xf32>
    %cst_25 = arith.constant 1.000000e+00 : f32
    %92 = vector.broadcast %cst_25 : f32 to vector<2x96xf32>
    %93 = arith.addf %92, %91 : vector<2x96xf32>
    %94 = arith.divf %92, %93 : vector<2x96xf32>
    %95 = vector.extract_strided_slice %88 {offsets = [0, 96], sizes = [2, 32], strides = [1, 1]} : vector<2x128xf32> to vector<2x32xf32>
    %96 = math.tanh %95 : vector<2x32xf32>
    %97 = vector.extract_strided_slice %94 {offsets = [0, 0], sizes = [2, 32], strides = [1, 1]} : vector<2x96xf32> to vector<2x32xf32>
    %98 = vector.extract_strided_slice %94 {offsets = [0, 32], sizes = [2, 32], strides = [1, 1]} : vector<2x96xf32> to vector<2x32xf32>
    %99 = vector.extract_strided_slice %94 {offsets = [0, 64], sizes = [2, 32], strides = [1, 1]} : vector<2x96xf32> to vector<2x32xf32>
    %100 = arith.mulf %98, %83 : vector<2x32xf32>
    %101 = arith.mulf %97, %96 : vector<2x32xf32>
    %102 = arith.addf %100, %101 : vector<2x32xf32>
    %103 = math.tanh %102 : vector<2x32xf32>
    %104 = arith.mulf %99, %103 : vector<2x32xf32>
    %105 = arith.addi %4, %c2_i32 : i32
    %106 = vector.broadcast %105 : i32 to vector<2x1xi32>
    %107 = arith.cmpi slt, %106, %3 : vector<2x1xi32>
    %cst_26 = arith.constant 0.000000e+00 : f32
    %108 = vector.shape_cast %107 : vector<2x1xi1> to vector<2x1xi1>
    %109 = vector.broadcast %108 : vector<2x1xi1> to vector<2x32xi1>
    %110 = vector.broadcast %cst_26 : f32 to vector<2x32xf32>
    %111 = arith.select %109, %104, %110 : vector<2x32xi1>, vector<2x32xf32>
    %112 = arith.index_cast %c2_i32 : i32 to index
    %c0_27 = arith.constant 0 : index
    %c0_28 = arith.constant 0 : index
    %113 = vector.load %arg4[%112, %c0_27, %c0_28] : memref<8x2x32xf32, #tpu.memory_space<vmem>>, vector<1x2x32xf32>
    %114 = vector.shape_cast %113 : vector<1x2x32xf32> to vector<2x32xf32>
    %115 = vector.shape_cast %111 : vector<2x32xf32> to vector<1x2x32xf32>
    tpu.vector_store %arg4[%112, %c0_27, %c0_28], %115 {strides = array<i32>} : memref<8x2x32xf32, #tpu.memory_space<vmem>>, vector<1x2x32xf32>,
    %116 = vector.shape_cast %107 : vector<2x1xi1> to vector<2x1xi1>
    %117 = vector.broadcast %116 : vector<2x1xi1> to vector<2x32xi1>
    %118 = arith.select %117, %104, %80 : vector<2x32xi1>, vector<2x32xf32>
    %119 = vector.shape_cast %107 : vector<2x1xi1> to vector<2x1xi1>
    %120 = vector.broadcast %119 : vector<2x1xi1> to vector<2x32xi1>
    %121 = arith.select %120, %102, %83 : vector<2x32xi1>, vector<2x32xf32>
    %c3_i32 = arith.constant 3 : i32
    %122 = arith.index_cast %c3_i32 : i32 to index
    %c0_29 = arith.constant 0 : index
    %c0_30 = arith.constant 0 : index
    %123 = vector.load %arg2[%122, %c0_29, %c0_30] : memref<8x2x128xf32, #tpu.memory_space<vmem>>, vector<1x2x128xf32>
    %124 = vector.shape_cast %123 : vector<1x2x128xf32> to vector<2x128xf32>
    %cst_31 = arith.constant dense<0.000000e+00> : vector<2x128xf32>
    %125 = tpu.matmul %118, %5, %cst_31 {dimension_numbers = #tpu.dot_dimension_numbers<[1], [0], [0], [1], [0, 0, 1, 1], [], []>} : vector<2x32xf32>, vector<32x128xf32>, vector<2x128xf32> -> vector<2x128xf32>
    %126 = arith.addf %124, %125 : vector<2x128xf32>
    %127 = vector.extract_strided_slice %126 {offsets = [0, 0], sizes = [2, 96], strides = [1, 1]} : vector<2x128xf32> to vector<2x96xf32>
    %128 = arith.negf %127 : vector<2x96xf32>
    %129 = math.exp %128 : vector<2x96xf32>
    %cst_32 = arith.constant 1.000000e+00 : f32
    %130 = vector.broadcast %cst_32 : f32 to vector<2x96xf32>
    %131 = arith.addf %130, %129 : vector<2x96xf32>
    %132 = arith.divf %130, %131 : vector<2x96xf32>
    %133 = vector.extract_strided_slice %126 {offsets = [0, 96], sizes = [2, 32], strides = [1, 1]} : vector<2x128xf32> to vector<2x32xf32>
    %134 = math.tanh %133 : vector<2x32xf32>
    %135 = vector.extract_strided_slice %132 {offsets = [0, 0], sizes = [2, 32], strides = [1, 1]} : vector<2x96xf32> to vector<2x32xf32>
    %136 = vector.extract_strided_slice %132 {offsets = [0, 32], sizes = [2, 32], strides = [1, 1]} : vector<2x96xf32> to vector<2x32xf32>
    %137 = vector.extract_strided_slice %132 {offsets = [0, 64], sizes = [2, 32], strides = [1, 1]} : vector<2x96xf32> to vector<2x32xf32>
    %138 = arith.mulf %136, %121 : vector<2x32xf32>
    %139 = arith.mulf %135, %134 : vector<2x32xf32>
    %140 = arith.addf %138, %139 : vector<2x32xf32>
    %141 = math.tanh %140 : vector<2x32xf32>
    %142 = arith.mulf %137, %141 : vector<2x32xf32>
    %143 = arith.addi %4, %c3_i32 : i32
    %144 = vector.broadcast %143 : i32 to vector<2x1xi32>
    %145 = arith.cmpi slt, %144, %3 : vector<2x1xi32>
    %cst_33 = arith.constant 0.000000e+00 : f32
    %146 = vector.shape_cast %145 : vector<2x1xi1> to vector<2x1xi1>
    %147 = vector.broadcast %146 : vector<2x1xi1> to vector<2x32xi1>
    %148 = vector.broadcast %cst_33 : f32 to vector<2x32xf32>
    %149 = arith.select %147, %142, %148 : vector<2x32xi1>, vector<2x32xf32>
    %150 = arith.index_cast %c3_i32 : i32 to index
    %c0_34 = arith.constant 0 : index
    %c0_35 = arith.constant 0 : index
    %151 = vector.load %arg4[%150, %c0_34, %c0_35] : memref<8x2x32xf32, #tpu.memory_space<vmem>>, vector<1x2x32xf32>
    %152 = vector.shape_cast %151 : vector<1x2x32xf32> to vector<2x32xf32>
    %153 = vector.shape_cast %149 : vector<2x32xf32> to vector<1x2x32xf32>
    tpu.vector_store %arg4[%150, %c0_34, %c0_35], %153 {strides = array<i32>} : memref<8x2x32xf32, #tpu.memory_space<vmem>>, vector<1x2x32xf32>,
    %154 = vector.shape_cast %145 : vector<2x1xi1> to vector<2x1xi1>
    %155 = vector.broadcast %154 : vector<2x1xi1> to vector<2x32xi1>
    %156 = arith.select %155, %142, %118 : vector<2x32xi1>, vector<2x32xf32>
    %157 = vector.shape_cast %145 : vector<2x1xi1> to vector<2x1xi1>
    %158 = vector.broadcast %157 : vector<2x1xi1> to vector<2x32xi1>
    %159 = arith.select %158, %140, %121 : vector<2x32xi1>, vector<2x32xf32>
    %c4_i32 = arith.constant 4 : i32
    %160 = arith.index_cast %c4_i32 : i32 to index
    %c0_36 = arith.constant 0 : index
    %c0_37 = arith.constant 0 : index
    %161 = vector.load %arg2[%160, %c0_36, %c0_37] : memref<8x2x128xf32, #tpu.memory_space<vmem>>, vector<1x2x128xf32>
    %162 = vector.shape_cast %161 : vector<1x2x128xf32> to vector<2x128xf32>
    %cst_38 = arith.constant dense<0.000000e+00> : vector<2x128xf32>
    %163 = tpu.matmul %156, %5, %cst_38 {dimension_numbers = #tpu.dot_dimension_numbers<[1], [0], [0], [1], [0, 0, 1, 1], [], []>} : vector<2x32xf32>, vector<32x128xf32>, vector<2x128xf32> -> vector<2x128xf32>
    %164 = arith.addf %162, %163 : vector<2x128xf32>
    %165 = vector.extract_strided_slice %164 {offsets = [0, 0], sizes = [2, 96], strides = [1, 1]} : vector<2x128xf32> to vector<2x96xf32>
    %166 = arith.negf %165 : vector<2x96xf32>
    %167 = math.exp %166 : vector<2x96xf32>
    %cst_39 = arith.constant 1.000000e+00 : f32
    %168 = vector.broadcast %cst_39 : f32 to vector<2x96xf32>
    %169 = arith.addf %168, %167 : vector<2x96xf32>
    %170 = arith.divf %168, %169 : vector<2x96xf32>
    %171 = vector.extract_strided_slice %164 {offsets = [0, 96], sizes = [2, 32], strides = [1, 1]} : vector<2x128xf32> to vector<2x32xf32>
    %172 = math.tanh %171 : vector<2x32xf32>
    %173 = vector.extract_strided_slice %170 {offsets = [0, 0], sizes = [2, 32], strides = [1, 1]} : vector<2x96xf32> to vector<2x32xf32>
    %174 = vector.extract_strided_slice %170 {offsets = [0, 32], sizes = [2, 32], strides = [1, 1]} : vector<2x96xf32> to vector<2x32xf32>
    %175 = vector.extract_strided_slice %170 {offsets = [0, 64], sizes = [2, 32], strides = [1, 1]} : vector<2x96xf32> to vector<2x32xf32>
    %176 = arith.mulf %174, %159 : vector<2x32xf32>
    %177 = arith.mulf %173, %172 : vector<2x32xf32>
    %178 = arith.addf %176, %177 : vector<2x32xf32>
    %179 = math.tanh %178 : vector<2x32xf32>
    %180 = arith.mulf %175, %179 : vector<2x32xf32>
    %181 = arith.addi %4, %c4_i32 : i32
    %182 = vector.broadcast %181 : i32 to vector<2x1xi32>
    %183 = arith.cmpi slt, %182, %3 : vector<2x1xi32>
    %cst_40 = arith.constant 0.000000e+00 : f32
    %184 = vector.shape_cast %183 : vector<2x1xi1> to vector<2x1xi1>
    %185 = vector.broadcast %184 : vector<2x1xi1> to vector<2x32xi1>
    %186 = vector.broadcast %cst_40 : f32 to vector<2x32xf32>
    %187 = arith.select %185, %180, %186 : vector<2x32xi1>, vector<2x32xf32>
    %188 = arith.index_cast %c4_i32 : i32 to index
    %c0_41 = arith.constant 0 : index
    %c0_42 = arith.constant 0 : index
    %189 = vector.load %arg4[%188, %c0_41, %c0_42] : memref<8x2x32xf32, #tpu.memory_space<vmem>>, vector<1x2x32xf32>
    %190 = vector.shape_cast %189 : vector<1x2x32xf32> to vector<2x32xf32>
    %191 = vector.shape_cast %187 : vector<2x32xf32> to vector<1x2x32xf32>
    tpu.vector_store %arg4[%188, %c0_41, %c0_42], %191 {strides = array<i32>} : memref<8x2x32xf32, #tpu.memory_space<vmem>>, vector<1x2x32xf32>,
    %192 = vector.shape_cast %183 : vector<2x1xi1> to vector<2x1xi1>
    %193 = vector.broadcast %192 : vector<2x1xi1> to vector<2x32xi1>
    %194 = arith.select %193, %180, %156 : vector<2x32xi1>, vector<2x32xf32>
    %195 = vector.shape_cast %183 : vector<2x1xi1> to vector<2x1xi1>
    %196 = vector.broadcast %195 : vector<2x1xi1> to vector<2x32xi1>
    %197 = arith.select %196, %178, %159 : vector<2x32xi1>, vector<2x32xf32>
    %c5_i32 = arith.constant 5 : i32
    %198 = arith.index_cast %c5_i32 : i32 to index
    %c0_43 = arith.constant 0 : index
    %c0_44 = arith.constant 0 : index
    %199 = vector.load %arg2[%198, %c0_43, %c0_44] : memref<8x2x128xf32, #tpu.memory_space<vmem>>, vector<1x2x128xf32>
    %200 = vector.shape_cast %199 : vector<1x2x128xf32> to vector<2x128xf32>
    %cst_45 = arith.constant dense<0.000000e+00> : vector<2x128xf32>
    %201 = tpu.matmul %194, %5, %cst_45 {dimension_numbers = #tpu.dot_dimension_numbers<[1], [0], [0], [1], [0, 0, 1, 1], [], []>} : vector<2x32xf32>, vector<32x128xf32>, vector<2x128xf32> -> vector<2x128xf32>
    %202 = arith.addf %200, %201 : vector<2x128xf32>
    %203 = vector.extract_strided_slice %202 {offsets = [0, 0], sizes = [2, 96], strides = [1, 1]} : vector<2x128xf32> to vector<2x96xf32>
    %204 = arith.negf %203 : vector<2x96xf32>
    %205 = math.exp %204 : vector<2x96xf32>
    %cst_46 = arith.constant 1.000000e+00 : f32
    %206 = vector.broadcast %cst_46 : f32 to vector<2x96xf32>
    %207 = arith.addf %206, %205 : vector<2x96xf32>
    %208 = arith.divf %206, %207 : vector<2x96xf32>
    %209 = vector.extract_strided_slice %202 {offsets = [0, 96], sizes = [2, 32], strides = [1, 1]} : vector<2x128xf32> to vector<2x32xf32>
    %210 = math.tanh %209 : vector<2x32xf32>
    %211 = vector.extract_strided_slice %208 {offsets = [0, 0], sizes = [2, 32], strides = [1, 1]} : vector<2x96xf32> to vector<2x32xf32>
    %212 = vector.extract_strided_slice %208 {offsets = [0, 32], sizes = [2, 32], strides = [1, 1]} : vector<2x96xf32> to vector<2x32xf32>
    %213 = vector.extract_strided_slice %208 {offsets = [0, 64], sizes = [2, 32], strides = [1, 1]} : vector<2x96xf32> to vector<2x32xf32>
    %214 = arith.mulf %212, %197 : vector<2x32xf32>
    %215 = arith.mulf %211, %210 : vector<2x32xf32>
    %216 = arith.addf %214, %215 : vector<2x32xf32>
    %217 = math.tanh %216 : vector<2x32xf32>
    %218 = arith.mulf %213, %217 : vector<2x32xf32>
    %219 = arith.addi %4, %c5_i32 : i32
    %220 = vector.broadcast %219 : i32 to vector<2x1xi32>
    %221 = arith.cmpi slt, %220, %3 : vector<2x1xi32>
    %cst_47 = arith.constant 0.000000e+00 : f32
    %222 = vector.shape_cast %221 : vector<2x1xi1> to vector<2x1xi1>
    %223 = vector.broadcast %222 : vector<2x1xi1> to vector<2x32xi1>
    %224 = vector.broadcast %cst_47 : f32 to vector<2x32xf32>
    %225 = arith.select %223, %218, %224 : vector<2x32xi1>, vector<2x32xf32>
    %226 = arith.index_cast %c5_i32 : i32 to index
    %c0_48 = arith.constant 0 : index
    %c0_49 = arith.constant 0 : index
    %227 = vector.load %arg4[%226, %c0_48, %c0_49] : memref<8x2x32xf32, #tpu.memory_space<vmem>>, vector<1x2x32xf32>
    %228 = vector.shape_cast %227 : vector<1x2x32xf32> to vector<2x32xf32>
    %229 = vector.shape_cast %225 : vector<2x32xf32> to vector<1x2x32xf32>
    tpu.vector_store %arg4[%226, %c0_48, %c0_49], %229 {strides = array<i32>} : memref<8x2x32xf32, #tpu.memory_space<vmem>>, vector<1x2x32xf32>,
    %230 = vector.shape_cast %221 : vector<2x1xi1> to vector<2x1xi1>
    %231 = vector.broadcast %230 : vector<2x1xi1> to vector<2x32xi1>
    %232 = arith.select %231, %218, %194 : vector<2x32xi1>, vector<2x32xf32>
    %233 = vector.shape_cast %221 : vector<2x1xi1> to vector<2x1xi1>
    %234 = vector.broadcast %233 : vector<2x1xi1> to vector<2x32xi1>
    %235 = arith.select %234, %216, %197 : vector<2x32xi1>, vector<2x32xf32>
    %c6_i32 = arith.constant 6 : i32
    %236 = arith.index_cast %c6_i32 : i32 to index
    %c0_50 = arith.constant 0 : index
    %c0_51 = arith.constant 0 : index
    %237 = vector.load %arg2[%236, %c0_50, %c0_51] : memref<8x2x128xf32, #tpu.memory_space<vmem>>, vector<1x2x128xf32>
    %238 = vector.shape_cast %237 : vector<1x2x128xf32> to vector<2x128xf32>
    %cst_52 = arith.constant dense<0.000000e+00> : vector<2x128xf32>
    %239 = tpu.matmul %232, %5, %cst_52 {dimension_numbers = #tpu.dot_dimension_numbers<[1], [0], [0], [1], [0, 0, 1, 1], [], []>} : vector<2x32xf32>, vector<32x128xf32>, vector<2x128xf32> -> vector<2x128xf32>
    %240 = arith.addf %238, %239 : vector<2x128xf32>
    %241 = vector.extract_strided_slice %240 {offsets = [0, 0], sizes = [2, 96], strides = [1, 1]} : vector<2x128xf32> to vector<2x96xf32>
    %242 = arith.negf %241 : vector<2x96xf32>
    %243 = math.exp %242 : vector<2x96xf32>
    %cst_53 = arith.constant 1.000000e+00 : f32
    %244 = vector.broadcast %cst_53 : f32 to vector<2x96xf32>
    %245 = arith.addf %244, %243 : vector<2x96xf32>
    %246 = arith.divf %244, %245 : vector<2x96xf32>
    %247 = vector.extract_strided_slice %240 {offsets = [0, 96], sizes = [2, 32], strides = [1, 1]} : vector<2x128xf32> to vector<2x32xf32>
    %248 = math.tanh %247 : vector<2x32xf32>
    %249 = vector.extract_strided_slice %246 {offsets = [0, 0], sizes = [2, 32], strides = [1, 1]} : vector<2x96xf32> to vector<2x32xf32>
    %250 = vector.extract_strided_slice %246 {offsets = [0, 32], sizes = [2, 32], strides = [1, 1]} : vector<2x96xf32> to vector<2x32xf32>
    %251 = vector.extract_strided_slice %246 {offsets = [0, 64], sizes = [2, 32], strides = [1, 1]} : vector<2x96xf32> to vector<2x32xf32>
    %252 = arith.mulf %250, %235 : vector<2x32xf32>
    %253 = arith.mulf %249, %248 : vector<2x32xf32>
    %254 = arith.addf %252, %253 : vector<2x32xf32>
    %255 = math.tanh %254 : vector<2x32xf32>
    %256 = arith.mulf %251, %255 : vector<2x32xf32>
    %257 = arith.addi %4, %c6_i32 : i32
    %258 = vector.broadcast %257 : i32 to vector<2x1xi32>
    %259 = arith.cmpi slt, %258, %3 : vector<2x1xi32>
    %cst_54 = arith.constant 0.000000e+00 : f32
    %260 = vector.shape_cast %259 : vector<2x1xi1> to vector<2x1xi1>
    %261 = vector.broadcast %260 : vector<2x1xi1> to vector<2x32xi1>
    %262 = vector.broadcast %cst_54 : f32 to vector<2x32xf32>
    %263 = arith.select %261, %256, %262 : vector<2x32xi1>, vector<2x32xf32>
    %264 = arith.index_cast %c6_i32 : i32 to index
    %c0_55 = arith.constant 0 : index
    %c0_56 = arith.constant 0 : index
    %265 = vector.load %arg4[%264, %c0_55, %c0_56] : memref<8x2x32xf32, #tpu.memory_space<vmem>>, vector<1x2x32xf32>
    %266 = vector.shape_cast %265 : vector<1x2x32xf32> to vector<2x32xf32>
    %267 = vector.shape_cast %263 : vector<2x32xf32> to vector<1x2x32xf32>
    tpu.vector_store %arg4[%264, %c0_55, %c0_56], %267 {strides = array<i32>} : memref<8x2x32xf32, #tpu.memory_space<vmem>>, vector<1x2x32xf32>,
    %268 = vector.shape_cast %259 : vector<2x1xi1> to vector<2x1xi1>
    %269 = vector.broadcast %268 : vector<2x1xi1> to vector<2x32xi1>
    %270 = arith.select %269, %256, %232 : vector<2x32xi1>, vector<2x32xf32>
    %271 = vector.shape_cast %259 : vector<2x1xi1> to vector<2x1xi1>
    %272 = vector.broadcast %271 : vector<2x1xi1> to vector<2x32xi1>
    %273 = arith.select %272, %254, %235 : vector<2x32xi1>, vector<2x32xf32>
    %c7_i32 = arith.constant 7 : i32
    %274 = arith.index_cast %c7_i32 : i32 to index
    %c0_57 = arith.constant 0 : index
    %c0_58 = arith.constant 0 : index
    %275 = vector.load %arg2[%274, %c0_57, %c0_58] : memref<8x2x128xf32, #tpu.memory_space<vmem>>, vector<1x2x128xf32>
    %276 = vector.shape_cast %275 : vector<1x2x128xf32> to vector<2x128xf32>
    %cst_59 = arith.constant dense<0.000000e+00> : vector<2x128xf32>
    %277 = tpu.matmul %270, %5, %cst_59 {dimension_numbers = #tpu.dot_dimension_numbers<[1], [0], [0], [1], [0, 0, 1, 1], [], []>} : vector<2x32xf32>, vector<32x128xf32>, vector<2x128xf32> -> vector<2x128xf32>
    %278 = arith.addf %276, %277 : vector<2x128xf32>
    %279 = vector.extract_strided_slice %278 {offsets = [0, 0], sizes = [2, 96], strides = [1, 1]} : vector<2x128xf32> to vector<2x96xf32>
    %280 = arith.negf %279 : vector<2x96xf32>
    %281 = math.exp %280 : vector<2x96xf32>
    %cst_60 = arith.constant 1.000000e+00 : f32
    %282 = vector.broadcast %cst_60 : f32 to vector<2x96xf32>
    %283 = arith.addf %282, %281 : vector<2x96xf32>
    %284 = arith.divf %282, %283 : vector<2x96xf32>
    %285 = vector.extract_strided_slice %278 {offsets = [0, 96], sizes = [2, 32], strides = [1, 1]} : vector<2x128xf32> to vector<2x32xf32>
    %286 = math.tanh %285 : vector<2x32xf32>
    %287 = vector.extract_strided_slice %284 {offsets = [0, 0], sizes = [2, 32], strides = [1, 1]} : vector<2x96xf32> to vector<2x32xf32>
    %288 = vector.extract_strided_slice %284 {offsets = [0, 32], sizes = [2, 32], strides = [1, 1]} : vector<2x96xf32> to vector<2x32xf32>
    %289 = vector.extract_strided_slice %284 {offsets = [0, 64], sizes = [2, 32], strides = [1, 1]} : vector<2x96xf32> to vector<2x32xf32>
    %290 = arith.mulf %288, %273 : vector<2x32xf32>
    %291 = arith.mulf %287, %286 : vector<2x32xf32>
    %292 = arith.addf %290, %291 : vector<2x32xf32>
    %293 = math.tanh %292 : vector<2x32xf32>
    %294 = arith.mulf %289, %293 : vector<2x32xf32>
    %295 = arith.addi %4, %c7_i32 : i32
    %296 = vector.broadcast %295 : i32 to vector<2x1xi32>
    %297 = arith.cmpi slt, %296, %3 : vector<2x1xi32>
    %cst_61 = arith.constant 0.000000e+00 : f32
    %298 = vector.shape_cast %297 : vector<2x1xi1> to vector<2x1xi1>
    %299 = vector.broadcast %298 : vector<2x1xi1> to vector<2x32xi1>
    %300 = vector.broadcast %cst_61 : f32 to vector<2x32xf32>
    %301 = arith.select %299, %294, %300 : vector<2x32xi1>, vector<2x32xf32>
    %302 = arith.index_cast %c7_i32 : i32 to index
    %c0_62 = arith.constant 0 : index
    %c0_63 = arith.constant 0 : index
    %303 = vector.load %arg4[%302, %c0_62, %c0_63] : memref<8x2x32xf32, #tpu.memory_space<vmem>>, vector<1x2x32xf32>
    %304 = vector.shape_cast %303 : vector<1x2x32xf32> to vector<2x32xf32>
    %305 = vector.shape_cast %301 : vector<2x32xf32> to vector<1x2x32xf32>
    tpu.vector_store %arg4[%302, %c0_62, %c0_63], %305 {strides = array<i32>} : memref<8x2x32xf32, #tpu.memory_space<vmem>>, vector<1x2x32xf32>,
    %306 = vector.shape_cast %297 : vector<2x1xi1> to vector<2x1xi1>
    %307 = vector.broadcast %306 : vector<2x1xi1> to vector<2x32xi1>
    %308 = arith.select %307, %294, %270 : vector<2x32xi1>, vector<2x32xf32>
    %309 = vector.shape_cast %297 : vector<2x1xi1> to vector<2x1xi1>
    %310 = vector.broadcast %309 : vector<2x1xi1> to vector<2x32xi1>
    %311 = arith.select %310, %292, %273 : vector<2x32xi1>, vector<2x32xf32>
    %c8_i32_64 = arith.constant 8 : i32
    %c0_65 = arith.constant 0 : index
    %c0_66 = arith.constant 0 : index
    %312 = vector.load %arg7[%c0_65, %c0_66] : memref<2x32xf32, #tpu.memory_space<vmem>>, vector<2x32xf32>
    tpu.vector_store %arg7[%c0_65, %c0_66], %308 {strides = array<i32>} : memref<2x32xf32, #tpu.memory_space<vmem>>, vector<2x32xf32>,
    %c0_67 = arith.constant 0 : index
    %c0_68 = arith.constant 0 : index
    %313 = vector.load %arg8[%c0_67, %c0_68] : memref<2x32xf32, #tpu.memory_space<vmem>>, vector<2x32xf32>
    tpu.vector_store %arg8[%c0_67, %c0_68], %311 {strides = array<i32>} : memref<2x32xf32, #tpu.memory_space<vmem>>, vector<2x32xf32>,
    %c0_i32_69 = arith.constant 0 : i32
    %314 = arith.cmpi eq, %arg0, %c0_i32_69 : i32
    %315 = arith.extui %314 : i1 to i32
    %c0_i32_70 = arith.constant 0 : i32
    %316 = arith.cmpi ne, %315, %c0_i32_70 : i32
    scf.if %316 {
      %c0_71 = arith.constant 0 : index
      %c0_72 = arith.constant 0 : index
      %317 = vector.load %arg5[%c0_71, %c0_72] : memref<2x32xf32, #tpu.memory_space<vmem>>, vector<2x32xf32>
      tpu.vector_store %arg5[%c0_71, %c0_72], %308 {strides = array<i32>} : memref<2x32xf32, #tpu.memory_space<vmem>>, vector<2x32xf32>,
      %c0_73 = arith.constant 0 : index
      %c0_74 = arith.constant 0 : index
      %318 = vector.load %arg6[%c0_73, %c0_74] : memref<2x32xf32, #tpu.memory_space<vmem>>, vector<2x32xf32>
      tpu.vector_store %arg6[%c0_73, %c0_74], %311 {strides = array<i32>} : memref<2x32xf32, #tpu.memory_space<vmem>>, vector<2x32xf32>,
    } else {
    }
    return
  }
  func.func @transform_0(%arg0: i32) -> (i32, i32) {
    %c0_i32 = arith.constant 0 : i32
    %c0_i32_0 = arith.constant 0 : i32
    %c0_i32_1 = arith.constant 0 : i32
    return %c0_i32, %c0_i32_0 : i32, i32
  }
  func.func @transform_1(%arg0: i32) -> (i32, i32, i32) {
    %c0_i32 = arith.constant 0 : i32
    %c0_i32_0 = arith.constant 0 : i32
    %c0_i32_1 = arith.constant 0 : i32
    return %arg0, %c0_i32, %c0_i32_0 : i32, i32, i32
  }
  func.func @transform_2(%arg0: i32) -> (i32, i32) {
    %c0_i32 = arith.constant 0 : i32
    %c0_i32_0 = arith.constant 0 : i32
    %c0_i32_1 = arith.constant 0 : i32
    return %c0_i32, %c0_i32_0 : i32, i32
  }
  func.func @transform_3(%arg0: i32) -> (i32, i32, i32) {
    %c0_i32 = arith.constant 0 : i32
    %c0_i32_0 = arith.constant 0 : i32
    %c0_i32_1 = arith.constant 0 : i32
    return %arg0, %c0_i32, %c0_i32_0 : i32, i32, i32
  }
  func.func @transform_4(%arg0: i32) -> (i32, i32) {
    %c0_i32 = arith.constant 0 : i32
    %c0_i32_0 = arith.constant 0 : i32
    %c0_i32_1 = arith.constant 0 : i32
    return %c0_i32, %c0_i32_0 : i32, i32
  }
  func.func @transform_5(%arg0: i32) -> (i32, i32) {
    %c0_i32 = arith.constant 0 : i32
    %c0_i32_0 = arith.constant 0 : i32
    %c0_i32_1 = arith.constant 0 : i32
    return %c0_i32, %c0_i32_0 : i32, i32
  }
}

</mosaic_0001>

<llo_original>
// kernel: encoder_lstm_forward.1
$region0: #{encoder_lstm_forward.1}
  #allocation0 [shape = 'u32[]', space=smem, size = 0x4, offset = 0x4, fixed_abs, tag = 'smem constant byte address 0x4 - core index']
  #allocation1 [shape = 'u32[72,128]{1,0:T(1,128)}', space=vmem, size = 0x9000, scoped, tag = 'internal scratch']
  #allocation2 [shape = 'f32[2,32]{1,0:T(2,128)}', space=vmem, size = 0x400, scoped, tag = 'scratch operand']
  #allocation3 [shape = 'f32[2,32]{1,0:T(2,128)}', space=vmem, size = 0x400, scoped, tag = 'scratch operand']
  %s0 = inlined_call_operand.vmem [shape: s32[2,1], index: 0, kind: input, shape index: {}]
  %s1 = inlined_call_operand.vmem [shape: f32[8,2,128], index: 1, kind: input, shape index: {}]
  %s2 = inlined_call_operand.vmem [shape: f32[32,128], index: 2, kind: input, shape index: {}]
  %s3 = inlined_call_operand.vmem [shape: f32[8,2,32], index: 3, kind: output, shape index: {0}]
  %s4 = inlined_call_operand.vmem [shape: f32[2,32], index: 4, kind: output, shape index: {1}]
  %s5 = inlined_call_operand.hbm [shape: f32[2,32], index: 5, kind: output, shape index: {2}]
  %6 = xla_tuple %s3, %s4, %s5
  %s7 = sld [smem:[#allocation0]]
  $region46: #{encoder_lstm_forward.1} parent=0
    _
  %s9 = ssub.s32 1, %s7
  %s10 = scalar_select 0, %s9, %s7
  $region1: #{encoder_lstm_forward.1} parent=0
    #allocation4 [shape = 'u8[1024]{0}', space=vmem, size = 0x400, scoped, tag = 'output window, operand 2, single buffered']
    #allocation5 [shape = 's32[1]{0}', space=sflag, size = 0x4, scoped, tag = 'scoped memory for encoder_lstm_forward.1']
    %11 = vsyncpa [#allocation5], 0
    // Predicated region
    $region2: #{encoder_lstm_forward.1} parent=1 // pred_check
      _
    $region3: #{encoder_lstm_forward.1} parent=1 // pred_check_branch
      %13 = sbr.rel (0) target = $region5
    $region4: #{encoder_lstm_forward.1} parent=1 // pred_region
      _
    $region5: #{encoder_lstm_forward.1} parent=1 // pred_fallthru
      _
    // Predicated region
    $region6: #{encoder_lstm_forward.1} parent=1 // pred_check
      _
    $region7: #{encoder_lstm_forward.1} parent=1 // pred_check_branch
      %15 = sbr.rel (0) target = $region9
    $region8: #{encoder_lstm_forward.1} parent=1 // pred_region
      _
    $region9: #{encoder_lstm_forward.1} parent=1 // pred_fallthru
      _
    // Predicated region
    $region10: #{encoder_lstm_forward.1} parent=1 // pred_check
      _
    $region11: #{encoder_lstm_forward.1} parent=1 // pred_check_branch
      %17 = sbr.rel (0) target = $region13
    $region12: #{encoder_lstm_forward.1} parent=1 // pred_region
      _
    $region13: #{encoder_lstm_forward.1} parent=1 // pred_fallthru
      _
    %p18 = scmp.eq.s32.totalorder 0, 0
    // Predicated region
    $region14: #{encoder_lstm_forward.1} parent=1 // pred_check
      %p19 = pneg %p18
    $region15: #{encoder_lstm_forward.1} parent=1 // pred_check_branch
      %21 = sbr.rel (%p19) target = $region17
    $region16: #{encoder_lstm_forward.1} parent=1 // pred_region
      %vm22 = vcmask 254976
      %23 = vst.msk [vmem:[#allocation2] sm:$0x3] %vm22, 0.0
      %24 = vst.msk [vmem:[#allocation3] sm:$0x3] %vm22, 0.0
    $region17: #{encoder_lstm_forward.1} parent=1 // pred_fallthru
      _
    %v25 = vld [vmem:[%s0] sm:$0x3]
    %s26 = smul.u32 0, 8
    %v27 = vld [vmem:[%s2] sm:$0xff]
    %v28 = vld [vmem:[%s2 + $0x8] sm:$0xff]
    %v29 = vld [vmem:[%s2 + $0x10] sm:$0xff]
    %v30 = vld [vmem:[%s2 + $0x18] sm:$0xff]
    %v31 = vld [vmem:[#allocation2] sm:$0x3]
    %v32 = vld [vmem:[#allocation3] sm:$0x3]
    %v33 = vld [vmem:[%s1] sm:$0x3]
    %vm34 = vcmask 261120
    %v36 = vsel %vm34, %v31, 0
    %38 = vmatpush.msra.mxu0 0.0
    %39 = vmatpush.msra.mxu0 0.0
    %40 = vmatpush.msra.mxu0 0.0
    %41 = vmatpush.msra.mxu0 0.0
    %42 = vmatpush.msra.mxu0 0.0
    %43 = vmatpush.msra.mxu0 0.0
    %44 = vmatpush.msra.mxu0 0.0
    %45 = vmatpush.msra.mxu0 0.0
    %46 = vmatpush.msra.mxu0 0.0
    %47 = vmatpush.msra.mxu0 0.0
    %48 = vmatpush.msra.mxu0 0.0
    %49 = vmatpush.msra.mxu0 0.0
    %50 = vmatpush.msra.mxu0 %v30
    %51 = vmatpush.msra.mxu0 %v29
    %52 = vmatpush.msra.mxu0 %v28
    %53 = vmatpush.msra.mxu0 %v27
    %54 = vmatmul.f32.gmra.mxu0 %v36
    %v55 = vpop.f32.mrf.mxu0
    %v56 = vadd.f32 0.0, %v55
    %57 = vdwg.mxu0
    %v58 = vadd.f32 %v33, %v56
    %v59 = vxor.u32 %v58, 2147483648
    %v60 = vmul.f32 %v59, 1.442695
    %v61 = vpow.pop %v60
    %v62 = vadd.f32 %v61, 1.0
    %v63 = vrcp.pop %v62
    %v64 = vmul.f32 %v62, %v63
    %v65 = vsub.f32 1.0, %v64
    %v66 = vmul.f32 %v63, %v65
    %v67 = vadd.f32 %v63, %v66
    %vm68 = vweird.f32 %v62
    %vm69 = vweird.f32 %v63
    %vm70 = vmor %vm68, %vm69
    %v71 = vsel %vm70, %v63, %v67
    %v72 = vand.u32 2147483647, %v62
    %vm73 = vcmp.eq.f32.partialorder %v72, 8.507059e+37
    %v74 = vand.u32 %v62, 2147483648
    %v75 = vor.u32 1.1754944e-38, %v74
    %v76 = vsel %vm73, %v75, %v71
    %v77 = vmul.f32 1.0, %v76
    %v78 = vtanh.pop %v58
    %80 = vrot.lane.b32.xlu0 %v32, 32
    %v81 = vpop.permute.xlu0 %80
    %v83 = vmul.f32 %v77, %v81
    %85 = vrot.lane.b32.xlu0 %v78, 32
    %v86 = vpop.permute.xlu0 %85
    %v88 = vmul.f32 %v77, %v86
    %90 = vrot.lane.b32.xlu0 %v88, 32
    %v91 = vpop.permute.xlu0 %90
    %v93 = vadd.f32 %v83, %v91
    %v94 = vtanh.pop %v93
    %96 = vrot.lane.b32.xlu0 %v94, 32
    %v97 = vpop.permute.xlu0 %96
    %v99 = vmul.f32 %v77, %v97
    %v100 = vstv %s26
    %vm101 = vcmp.lt.s32.totalorder %v100, %v25
    %v102 = vsel %vm101, 1, 0
    %103 = vset.pattern.permute.xlu0 0
    %104 = vperm.xlu0 %103, %v102
    %v105 = vpop.permute.xlu0 %104
    %vm106 = vcmp.eq.s32.totalorder %v105, 1
    %v107 = vsel %vm106, %v99, 0.0
    %109 = vrot.lane.b32.xlu0 %v107, 64
    %v110 = vpop.permute.xlu0 %109
    %vm112 = vcmask 254976
    %113 = vst.msk [vmem:[%s3] sm:$0x3] %vm112, %v110
    %114 = vrot.lane.b32.xlu0 %v31, 64
    %v115 = vpop.permute.xlu0 %114
    %v117 = vsel %vm106, %v99, %v115
    %v118 = vsel %vm106, %v93, %v81
    %s119 = scalar_lea.vmem %s1, 2
    %v120 = vld [vmem:[%s119] sm:$0x3]
    %122 = vrot.lane.b32.xlu0 %v117, 64
    %v123 = vpop.permute.xlu0 %122
    %v124 = vsel %vm34, %v123, 0
    %126 = vmatpush.msra.mxu0 0.0
    %127 = vmatpush.msra.mxu0 0.0
    %128 = vmatpush.msra.mxu0 0.0
    %129 = vmatpush.msra.mxu0 0.0
    %130 = vmatpush.msra.mxu0 0.0
    %131 = vmatpush.msra.mxu0 0.0
    %132 = vmatpush.msra.mxu0 0.0
    %133 = vmatpush.msra.mxu0 0.0
    %134 = vmatpush.msra.mxu0 0.0
    %135 = vmatpush.msra.mxu0 0.0
    %136 = vmatpush.msra.mxu0 0.0
    %137 = vmatpush.msra.mxu0 0.0
    %138 = vmatpush.msra.mxu0 %v30
    %139 = vmatpush.msra.mxu0 %v29
    %140 = vmatpush.msra.mxu0 %v28
    %141 = vmatpush.msra.mxu0 %v27
    %142 = vmatmul.f32.gmra.mxu0 %v124
    %v143 = vpop.f32.mrf.mxu0
    %v144 = vadd.f32 0.0, %v143
    %145 = vdwg.mxu0
    %v146 = vadd.f32 %v120, %v144
    %v147 = vxor.u32 %v146, 2147483648
    %v148 = vmul.f32 %v147, 1.442695
    %v149 = vpow.pop %v148
    %v150 = vadd.f32 %v149, 1.0
    %v151 = vrcp.pop %v150
    %v152 = vmul.f32 %v150, %v151
    %v153 = vsub.f32 1.0, %v152
    %v154 = vmul.f32 %v151, %v153
    %v155 = vadd.f32 %v151, %v154
    %vm156 = vweird.f32 %v150
    %vm157 = vweird.f32 %v151
    %vm158 = vmor %vm156, %vm157
    %v159 = vsel %vm158, %v151, %v155
    %v160 = vand.u32 2147483647, %v150
    %vm161 = vcmp.eq.f32.partialorder %v160, 8.507059e+37
    %v162 = vand.u32 %v150, 2147483648
    %v163 = vor.u32 1.1754944e-38, %v162
    %v164 = vsel %vm161, %v163, %v159
    %v165 = vmul.f32 1.0, %v164
    %v166 = vtanh.pop %v146
    %v167 = vmul.f32 %v165, %v118
    %169 = vrot.lane.b32.xlu0 %v166, 32
    %v170 = vpop.permute.xlu0 %169
    %v172 = vmul.f32 %v165, %v170
    %174 = vrot.lane.b32.xlu0 %v172, 32
    %v175 = vpop.permute.xlu0 %174
    %v177 = vadd.f32 %v167, %v175
    %v178 = vtanh.pop %v177
    %180 = vrot.lane.b32.xlu0 %v178, 32
    %v181 = vpop.permute.xlu0 %180
    %v183 = vmul.f32 %v165, %v181
    %s184 = sadd.s32 %s26, 1
    %v185 = vstv %s184
    %vm186 = vcmp.lt.s32.totalorder %v185, %v25
    %v187 = vsel %vm186, 1, 0
    %188 = vset.pattern.permute.xlu0 0
    %189 = vperm.xlu0 %188, %v187
    %v190 = vpop.permute.xlu0 %189
    %vm191 = vcmp.eq.s32.totalorder %v190, 1
    %v192 = vsel %vm191, %v183, 0.0
    %194 = vrot.lane.b32.xlu0 %v192, 64
    %v195 = vpop.permute.xlu0 %194
    %s197 = scalar_lea.vmem %s3, 2
    %198 = vst.msk [vmem:[%s197] sm:$0x3] %vm112, %v195
    %v199 = vsel %vm191, %v183, %v117
    %v200 = vsel %vm191, %v177, %v118
    %s201 = scalar_lea.vmem %s1, 4
    %v202 = vld [vmem:[%s201] sm:$0x3]
    %204 = vrot.lane.b32.xlu0 %v199, 64
    %v205 = vpop.permute.xlu0 %204
    %v206 = vsel %vm34, %v205, 0
    %208 = vmatpush.msra.mxu0 0.0
    %209 = vmatpush.msra.mxu0 0.0
    %210 = vmatpush.msra.mxu0 0.0
    %211 = vmatpush.msra.mxu0 0.0
    %212 = vmatpush.msra.mxu0 0.0
    %213 = vmatpush.msra.mxu0 0.0
    %214 = vmatpush.msra.mxu0 0.0
    %215 = vmatpush.msra.mxu0 0.0
    %216 = vmatpush.msra.mxu0 0.0
    %217 = vmatpush.msra.mxu0 0.0
    %218 = vmatpush.msra.mxu0 0.0
    %219 = vmatpush.msra.mxu0 0.0
    %220 = vmatpush.msra.mxu0 %v30
    %221 = vmatpush.msra.mxu0 %v29
    %222 = vmatpush.msra.mxu0 %v28
    %223 = vmatpush.msra.mxu0 %v27
    %224 = vmatmul.f32.gmra.mxu0 %v206
    %v225 = vpop.f32.mrf.mxu0
    %v226 = vadd.f32 0.0, %v225
    %227 = vdwg.mxu0
    %v228 = vadd.f32 %v202, %v226
    %v229 = vxor.u32 %v228, 2147483648
    %v230 = vmul.f32 %v229, 1.442695
    %v231 = vpow.pop %v230
    %v232 = vadd.f32 %v231, 1.0
    %v233 = vrcp.pop %v232
    %v234 = vmul.f32 %v232, %v233
    %v235 = vsub.f32 1.0, %v234
    %v236 = vmul.f32 %v233, %v235
    %v237 = vadd.f32 %v233, %v236
    %vm238 = vweird.f32 %v232
    %vm239 = vweird.f32 %v233
    %vm240 = vmor %vm238, %vm239
    %v241 = vsel %vm240, %v233, %v237
    %v242 = vand.u32 2147483647, %v232
    %vm243 = vcmp.eq.f32.partialorder %v242, 8.507059e+37
    %v244 = vand.u32 %v232, 2147483648
    %v245 = vor.u32 1.1754944e-38, %v244
    %v246 = vsel %vm243, %v245, %v241
    %v247 = vmul.f32 1.0, %v246
    %v248 = vtanh.pop %v228
    %v249 = vmul.f32 %v247, %v200
    %251 = vrot.lane.b32.xlu0 %v248, 32
    %v252 = vpop.permute.xlu0 %251
    %v254 = vmul.f32 %v247, %v252
    %256 = vrot.lane.b32.xlu0 %v254, 32
    %v257 = vpop.permute.xlu0 %256
    %v259 = vadd.f32 %v249, %v257
    %v260 = vtanh.pop %v259
    %262 = vrot.lane.b32.xlu0 %v260, 32
    %v263 = vpop.permute.xlu0 %262
    %v265 = vmul.f32 %v247, %v263
    %s266 = sadd.s32 %s26, 2
    %v267 = vstv %s266
    %vm268 = vcmp.lt.s32.totalorder %v267, %v25
    %v269 = vsel %vm268, 1, 0
    %270 = vset.pattern.permute.xlu0 0
    %271 = vperm.xlu0 %270, %v269
    %v272 = vpop.permute.xlu0 %271
    %vm273 = vcmp.eq.s32.totalorder %v272, 1
    %v274 = vsel %vm273, %v265, 0.0
    %276 = vrot.lane.b32.xlu0 %v274, 64
    %v277 = vpop.permute.xlu0 %276
    %s279 = scalar_lea.vmem %s3, 4
    %280 = vst.msk [vmem:[%s279] sm:$0x3] %vm112, %v277
    %v281 = vsel %vm273, %v265, %v199
    %v282 = vsel %vm273, %v259, %v200
    %s283 = scalar_lea.vmem %s1, 6
    %v284 = vld [vmem:[%s283] sm:$0x3]
    %286 = vrot.lane.b32.xlu0 %v281, 64
    %v287 = vpop.permute.xlu0 %286
    %v288 = vsel %vm34, %v287, 0
    %290 = vmatpush.msra.mxu0 0.0
    %291 = vmatpush.msra.mxu0 0.0
    %292 = vmatpush.msra.mxu0 0.0
    %293 = vmatpush.msra.mxu0 0.0
    %294 = vmatpush.msra.mxu0 0.0
    %295 = vmatpush.msra.mxu0 0.0
    %296 = vmatpush.msra.mxu0 0.0
    %297 = vmatpush.msra.mxu0 0.0
    %298 = vmatpush.msra.mxu0 0.0
    %299 = vmatpush.msra.mxu0 0.0
    %300 = vmatpush.msra.mxu0 0.0
    %301 = vmatpush.msra.mxu0 0.0
    %302 = vmatpush.msra.mxu0 %v30
    %303 = vmatpush.msra.mxu0 %v29
    %304 = vmatpush.msra.mxu0 %v28
    %305 = vmatpush.msra.mxu0 %v27
    %306 = vmatmul.f32.gmra.mxu0 %v288
    %v307 = vpop.f32.mrf.mxu0
    %v308 = vadd.f32 0.0, %v307
    %309 = vdwg.mxu0
    %v310 = vadd.f32 %v284, %v308
    %v311 = vxor.u32 %v310, 2147483648
    %v312 = vmul.f32 %v311, 1.442695
    %v313 = vpow.pop %v312
    %v314 = vadd.f32 %v313, 1.0
    %v315 = vrcp.pop %v314
    %v316 = vmul.f32 %v314, %v315
    %v317 = vsub.f32 1.0, %v316
    %v318 = vmul.f32 %v315, %v317
    %v319 = vadd.f32 %v315, %v318
    %vm320 = vweird.f32 %v314
    %vm321 = vweird.f32 %v315
    %vm322 = vmor %vm320, %vm321
    %v323 = vsel %vm322, %v315, %v319
    %v324 = vand.u32 2147483647, %v314
    %vm325 = vcmp.eq.f32.partialorder %v324, 8.507059e+37
    %v326 = vand.u32 %v314, 2147483648
    %v327 = vor.u32 1.1754944e-38, %v326
    %v328 = vsel %vm325, %v327, %v323
    %v329 = vmul.f32 1.0, %v328
    %v330 = vtanh.pop %v310
    %v331 = vmul.f32 %v329, %v282
    %333 = vrot.lane.b32.xlu0 %v330, 32
    %v334 = vpop.permute.xlu0 %333
    %v336 = vmul.f32 %v329, %v334
    %338 = vrot.lane.b32.xlu0 %v336, 32
    %v339 = vpop.permute.xlu0 %338
    %v341 = vadd.f32 %v331, %v339
    %v342 = vtanh.pop %v341
    %344 = vrot.lane.b32.xlu0 %v342, 32
    %v345 = vpop.permute.xlu0 %344
    %v347 = vmul.f32 %v329, %v345
    %s348 = sadd.s32 %s26, 3
    %v349 = vstv %s348
    %vm350 = vcmp.lt.s32.totalorder %v349, %v25
    %v351 = vsel %vm350, 1, 0
    %352 = vset.pattern.permute.xlu0 0
    %353 = vperm.xlu0 %352, %v351
    %v354 = vpop.permute.xlu0 %353
    %vm355 = vcmp.eq.s32.totalorder %v354, 1
    %v356 = vsel %vm355, %v347, 0.0
    %358 = vrot.lane.b32.xlu0 %v356, 64
    %v359 = vpop.permute.xlu0 %358
    %s361 = scalar_lea.vmem %s3, 6
    %362 = vst.msk [vmem:[%s361] sm:$0x3] %vm112, %v359
    %v363 = vsel %vm355, %v347, %v281
    %v364 = vsel %vm355, %v341, %v282
    %s365 = scalar_lea.vmem %s1, 8
    %v366 = vld [vmem:[%s365] sm:$0x3]
    %368 = vrot.lane.b32.xlu0 %v363, 64
    %v369 = vpop.permute.xlu0 %368
    %v370 = vsel %vm34, %v369, 0
    %372 = vmatpush.msra.mxu0 0.0
    %373 = vmatpush.msra.mxu0 0.0
    %374 = vmatpush.msra.mxu0 0.0
    %375 = vmatpush.msra.mxu0 0.0
    %376 = vmatpush.msra.mxu0 0.0
    %377 = vmatpush.msra.mxu0 0.0
    %378 = vmatpush.msra.mxu0 0.0
    %379 = vmatpush.msra.mxu0 0.0
    %380 = vmatpush.msra.mxu0 0.0
    %381 = vmatpush.msra.mxu0 0.0
    %382 = vmatpush.msra.mxu0 0.0
    %383 = vmatpush.msra.mxu0 0.0
    %384 = vmatpush.msra.mxu0 %v30
    %385 = vmatpush.msra.mxu0 %v29
    %386 = vmatpush.msra.mxu0 %v28
    %387 = vmatpush.msra.mxu0 %v27
    %388 = vmatmul.f32.gmra.mxu0 %v370
    %v389 = vpop.f32.mrf.mxu0
    %v390 = vadd.f32 0.0, %v389
    %391 = vdwg.mxu0
    %v392 = vadd.f32 %v366, %v390
    %v393 = vxor.u32 %v392, 2147483648
    %v394 = vmul.f32 %v393, 1.442695
    %v395 = vpow.pop %v394
    %v396 = vadd.f32 %v395, 1.0
    %v397 = vrcp.pop %v396
    %v398 = vmul.f32 %v396, %v397
    %v399 = vsub.f32 1.0, %v398
    %v400 = vmul.f32 %v397, %v399
    %v401 = vadd.f32 %v397, %v400
    %vm402 = vweird.f32 %v396
    %vm403 = vweird.f32 %v397
    %vm404 = vmor %vm402, %vm403
    %v405 = vsel %vm404, %v397, %v401
    %v406 = vand.u32 2147483647, %v396
    %vm407 = vcmp.eq.f32.partialorder %v406, 8.507059e+37
    %v408 = vand.u32 %v396, 2147483648
    %v409 = vor.u32 1.1754944e-38, %v408
    %v410 = vsel %vm407, %v409, %v405
    %v411 = vmul.f32 1.0, %v410
    %v412 = vtanh.pop %v392
    %v413 = vmul.f32 %v411, %v364
    %415 = vrot.lane.b32.xlu0 %v412, 32
    %v416 = vpop.permute.xlu0 %415
    %v418 = vmul.f32 %v411, %v416
    %420 = vrot.lane.b32.xlu0 %v418, 32
    %v421 = vpop.permute.xlu0 %420
    %v423 = vadd.f32 %v413, %v421
    %v424 = vtanh.pop %v423
    %426 = vrot.lane.b32.xlu0 %v424, 32
    %v427 = vpop.permute.xlu0 %426
    %v429 = vmul.f32 %v411, %v427
    %s430 = sadd.s32 %s26, 4
    %v431 = vstv %s430
    %vm432 = vcmp.lt.s32.totalorder %v431, %v25
    %v433 = vsel %vm432, 1, 0
    %434 = vset.pattern.permute.xlu0 0
    %435 = vperm.xlu0 %434, %v433
    %v436 = vpop.permute.xlu0 %435
    %vm437 = vcmp.eq.s32.totalorder %v436, 1
    %v438 = vsel %vm437, %v429, 0.0
    %440 = vrot.lane.b32.xlu0 %v438, 64
    %v441 = vpop.permute.xlu0 %440
    %s443 = scalar_lea.vmem %s3, 8
    %444 = vst.msk [vmem:[%s443] sm:$0x3] %vm112, %v441
    %v445 = vsel %vm437, %v429, %v363
    %v446 = vsel %vm437, %v423, %v364
    %s447 = scalar_lea.vmem %s1, 10
    %v448 = vld [vmem:[%s447] sm:$0x3]
    %450 = vrot.lane.b32.xlu0 %v445, 64
    %v451 = vpop.permute.xlu0 %450
    %v452 = vsel %vm34, %v451, 0
    %454 = vmatpush.msra.mxu0 0.0
    %455 = vmatpush.msra.mxu0 0.0
    %456 = vmatpush.msra.mxu0 0.0
    %457 = vmatpush.msra.mxu0 0.0
    %458 = vmatpush.msra.mxu0 0.0
    %459 = vmatpush.msra.mxu0 0.0
    %460 = vmatpush.msra.mxu0 0.0
    %461 = vmatpush.msra.mxu0 0.0
    %462 = vmatpush.msra.mxu0 0.0
    %463 = vmatpush.msra.mxu0 0.0
    %464 = vmatpush.msra.mxu0 0.0
    %465 = vmatpush.msra.mxu0 0.0
    %466 = vmatpush.msra.mxu0 %v30
    %467 = vmatpush.msra.mxu0 %v29
    %468 = vmatpush.msra.mxu0 %v28
    %469 = vmatpush.msra.mxu0 %v27
    %470 = vmatmul.f32.gmra.mxu0 %v452
    %v471 = vpop.f32.mrf.mxu0
    %v472 = vadd.f32 0.0, %v471
    %473 = vdwg.mxu0
    %v474 = vadd.f32 %v448, %v472
    %v475 = vxor.u32 %v474, 2147483648
    %v476 = vmul.f32 %v475, 1.442695
    %v477 = vpow.pop %v476
    %v478 = vadd.f32 %v477, 1.0
    %v479 = vrcp.pop %v478
    %v480 = vmul.f32 %v478, %v479
    %v481 = vsub.f32 1.0, %v480
    %v482 = vmul.f32 %v479, %v481
    %v483 = vadd.f32 %v479, %v482
    %vm484 = vweird.f32 %v478
    %vm485 = vweird.f32 %v479
    %vm486 = vmor %vm484, %vm485
    %v487 = vsel %vm486, %v479, %v483
    %v488 = vand.u32 2147483647, %v478
    %vm489 = vcmp.eq.f32.partialorder %v488, 8.507059e+37
    %v490 = vand.u32 %v478, 2147483648
    %v491 = vor.u32 1.1754944e-38, %v490
    %v492 = vsel %vm489, %v491, %v487
    %v493 = vmul.f32 1.0, %v492
    %v494 = vtanh.pop %v474
    %v495 = vmul.f32 %v493, %v446
    %497 = vrot.lane.b32.xlu0 %v494, 32
    %v498 = vpop.permute.xlu0 %497
    %v500 = vmul.f32 %v493, %v498
    %502 = vrot.lane.b32.xlu0 %v500, 32
    %v503 = vpop.permute.xlu0 %502
    %v505 = vadd.f32 %v495, %v503
    %v506 = vtanh.pop %v505
    %508 = vrot.lane.b32.xlu0 %v506, 32
    %v509 = vpop.permute.xlu0 %508
    %v511 = vmul.f32 %v493, %v509
    %s512 = sadd.s32 %s26, 5
    %v513 = vstv %s512
    %vm514 = vcmp.lt.s32.totalorder %v513, %v25
    %v515 = vsel %vm514, 1, 0
    %516 = vset.pattern.permute.xlu0 0
    %517 = vperm.xlu0 %516, %v515
    %v518 = vpop.permute.xlu0 %517
    %vm519 = vcmp.eq.s32.totalorder %v518, 1
    %v520 = vsel %vm519, %v511, 0.0
    %522 = vrot.lane.b32.xlu0 %v520, 64
    %v523 = vpop.permute.xlu0 %522
    %s525 = scalar_lea.vmem %s3, 10
    %526 = vst.msk [vmem:[%s525] sm:$0x3] %vm112, %v523
    %v527 = vsel %vm519, %v511, %v445
    %v528 = vsel %vm519, %v505, %v446
    %s529 = scalar_lea.vmem %s1, 12
    %v530 = vld [vmem:[%s529] sm:$0x3]
    %532 = vrot.lane.b32.xlu0 %v527, 64
    %v533 = vpop.permute.xlu0 %532
    %v534 = vsel %vm34, %v533, 0
    %536 = vmatpush.msra.mxu0 0.0
    %537 = vmatpush.msra.mxu0 0.0
    %538 = vmatpush.msra.mxu0 0.0
    %539 = vmatpush.msra.mxu0 0.0
    %540 = vmatpush.msra.mxu0 0.0
    %541 = vmatpush.msra.mxu0 0.0
    %542 = vmatpush.msra.mxu0 0.0
    %543 = vmatpush.msra.mxu0 0.0
    %544 = vmatpush.msra.mxu0 0.0
    %545 = vmatpush.msra.mxu0 0.0
    %546 = vmatpush.msra.mxu0 0.0
    %547 = vmatpush.msra.mxu0 0.0
    %548 = vmatpush.msra.mxu0 %v30
    %549 = vmatpush.msra.mxu0 %v29
    %550 = vmatpush.msra.mxu0 %v28
    %551 = vmatpush.msra.mxu0 %v27
    %552 = vmatmul.f32.gmra.mxu0 %v534
    %v553 = vpop.f32.mrf.mxu0
    %v554 = vadd.f32 0.0, %v553
    %555 = vdwg.mxu0
    %v556 = vadd.f32 %v530, %v554
    %v557 = vxor.u32 %v556, 2147483648
    %v558 = vmul.f32 %v557, 1.442695
    %v559 = vpow.pop %v558
    %v560 = vadd.f32 %v559, 1.0
    %v561 = vrcp.pop %v560
    %v562 = vmul.f32 %v560, %v561
    %v563 = vsub.f32 1.0, %v562
    %v564 = vmul.f32 %v561, %v563
    %v565 = vadd.f32 %v561, %v564
    %vm566 = vweird.f32 %v560
    %vm567 = vweird.f32 %v561
    %vm568 = vmor %vm566, %vm567
    %v569 = vsel %vm568, %v561, %v565
    %v570 = vand.u32 2147483647, %v560
    %vm571 = vcmp.eq.f32.partialorder %v570, 8.507059e+37
    %v572 = vand.u32 %v560, 2147483648
    %v573 = vor.u32 1.1754944e-38, %v572
    %v574 = vsel %vm571, %v573, %v569
    %v575 = vmul.f32 1.0, %v574
    %v576 = vtanh.pop %v556
    %v577 = vmul.f32 %v575, %v528
    %579 = vrot.lane.b32.xlu0 %v576, 32
    %v580 = vpop.permute.xlu0 %579
    %v582 = vmul.f32 %v575, %v580
    %584 = vrot.lane.b32.xlu0 %v582, 32
    %v585 = vpop.permute.xlu0 %584
    %v587 = vadd.f32 %v577, %v585
    %v588 = vtanh.pop %v587
    %590 = vrot.lane.b32.xlu0 %v588, 32
    %v591 = vpop.permute.xlu0 %590
    %v593 = vmul.f32 %v575, %v591
    %s594 = sadd.s32 %s26, 6
    %v595 = vstv %s594
    %vm596 = vcmp.lt.s32.totalorder %v595, %v25
    %v597 = vsel %vm596, 1, 0
    %598 = vset.pattern.permute.xlu0 0
    %599 = vperm.xlu0 %598, %v597
    %v600 = vpop.permute.xlu0 %599
    %vm601 = vcmp.eq.s32.totalorder %v600, 1
    %v602 = vsel %vm601, %v593, 0.0
    %604 = vrot.lane.b32.xlu0 %v602, 64
    %v605 = vpop.permute.xlu0 %604
    %s607 = scalar_lea.vmem %s3, 12
    %608 = vst.msk [vmem:[%s607] sm:$0x3] %vm112, %v605
    %v609 = vsel %vm601, %v593, %v527
    %v610 = vsel %vm601, %v587, %v528
    %s611 = scalar_lea.vmem %s1, 14
    %v612 = vld [vmem:[%s611] sm:$0x3]
    %614 = vrot.lane.b32.xlu0 %v609, 64
    %v615 = vpop.permute.xlu0 %614
    %v616 = vsel %vm34, %v615, 0
    %618 = vmatpush.msra.mxu0 0.0
    %619 = vmatpush.msra.mxu0 0.0
    %620 = vmatpush.msra.mxu0 0.0
    %621 = vmatpush.msra.mxu0 0.0
    %622 = vmatpush.msra.mxu0 0.0
    %623 = vmatpush.msra.mxu0 0.0
    %624 = vmatpush.msra.mxu0 0.0
    %625 = vmatpush.msra.mxu0 0.0
    %626 = vmatpush.msra.mxu0 0.0
    %627 = vmatpush.msra.mxu0 0.0
    %628 = vmatpush.msra.mxu0 0.0
    %629 = vmatpush.msra.mxu0 0.0
    %630 = vmatpush.msra.mxu0 %v30
    %631 = vmatpush.msra.mxu0 %v29
    %632 = vmatpush.msra.mxu0 %v28
    %633 = vmatpush.msra.mxu0 %v27
    %634 = vmatmul.f32.gmra.mxu0 %v616
    %v635 = vpop.f32.mrf.mxu0
    %v636 = vadd.f32 0.0, %v635
    %637 = vdwg.mxu0
    %v638 = vadd.f32 %v612, %v636
    %v639 = vxor.u32 %v638, 2147483648
    %v640 = vmul.f32 %v639, 1.442695
    %v641 = vpow.pop %v640
    %v642 = vadd.f32 %v641, 1.0
    %v643 = vrcp.pop %v642
    %v644 = vmul.f32 %v642, %v643
    %v645 = vsub.f32 1.0, %v644
    %v646 = vmul.f32 %v643, %v645
    %v647 = vadd.f32 %v643, %v646
    %vm648 = vweird.f32 %v642
    %vm649 = vweird.f32 %v643
    %vm650 = vmor %vm648, %vm649
    %v651 = vsel %vm650, %v643, %v647
    %v652 = vand.u32 2147483647, %v642
    %vm653 = vcmp.eq.f32.partialorder %v652, 8.507059e+37
    %v654 = vand.u32 %v642, 2147483648
    %v655 = vor.u32 1.1754944e-38, %v654
    %v656 = vsel %vm653, %v655, %v651
    %v657 = vmul.f32 1.0, %v656
    %v658 = vtanh.pop %v638
    %v659 = vmul.f32 %v657, %v610
    %661 = vrot.lane.b32.xlu0 %v658, 32
    %v662 = vpop.permute.xlu0 %661
    %v664 = vmul.f32 %v657, %v662
    %666 = vrot.lane.b32.xlu0 %v664, 32
    %v667 = vpop.permute.xlu0 %666
    %v669 = vadd.f32 %v659, %v667
    %v670 = vtanh.pop %v669
    %672 = vrot.lane.b32.xlu0 %v670, 32
    %v673 = vpop.permute.xlu0 %672
    %v675 = vmul.f32 %v657, %v673
    %s676 = sadd.s32 %s26, 7
    %v677 = vstv %s676
    %vm678 = vcmp.lt.s32.totalorder %v677, %v25
    %v679 = vsel %vm678, 1, 0
    %680 = vset.pattern.permute.xlu0 0
    %681 = vperm.xlu0 %680, %v679
    %v682 = vpop.permute.xlu0 %681
    %vm683 = vcmp.eq.s32.totalorder %v682, 1
    %v684 = vsel %vm683, %v675, 0.0
    %686 = vrot.lane.b32.xlu0 %v684, 64
    %v687 = vpop.permute.xlu0 %686
    %s689 = scalar_lea.vmem %s3, 14
    %690 = vst.msk [vmem:[%s689] sm:$0x3] %vm112, %v687
    %v691 = vsel %vm683, %v675, %v609
    %v692 = vsel %vm683, %v669, %v610
    %694 = vrot.lane.b32.xlu0 %v691, 64
    %v695 = vpop.permute.xlu0 %694
    %697 = vst.msk [vmem:[#allocation2] sm:$0x3] %vm112, %v695
    %699 = vrot.lane.b32.xlu0 %v692, 96
    %v700 = vpop.permute.xlu0 %699
    %702 = vst.msk [vmem:[#allocation3] sm:$0x3] %vm112, %v700
    // Predicated region
    $region18: #{encoder_lstm_forward.1} parent=1 // pred_check
      %p703 = pneg %p18
    $region19: #{encoder_lstm_forward.1} parent=1 // pred_check_branch
      %705 = sbr.rel (%p703) target = $region21
    $region20: #{encoder_lstm_forward.1} parent=1 // pred_region
      %706 = vst.msk [vmem:[%s4] sm:$0x3] %vm112, %v695
      %707 = vst.msk [vmem:[#allocation4] sm:$0x3] %vm112, %v700
    $region21: #{encoder_lstm_forward.1} parent=1 // pred_fallthru
      _
    // Predicated region
    $region22: #{encoder_lstm_forward.1} parent=1 // pred_check
      _
    $region23: #{encoder_lstm_forward.1} parent=1 // pred_check_branch
      %709 = sbr.rel (0) target = $region25
    $region24: #{encoder_lstm_forward.1} parent=1 // pred_region
      _
    $region25: #{encoder_lstm_forward.1} parent=1 // pred_fallthru
      _
    // Predicated region
    $region26: #{encoder_lstm_forward.1} parent=1 // pred_check
      _
    $region27: #{encoder_lstm_forward.1} parent=1 // pred_check_branch
      %711 = sbr.rel (0) target = $region29
    $region28: #{encoder_lstm_forward.1} parent=1 // pred_region
      _
    $region29: #{encoder_lstm_forward.1} parent=1 // pred_fallthru
      _
    // Predicated region
    $region30: #{encoder_lstm_forward.1} parent=1 // pred_check
      _
    $region31: #{encoder_lstm_forward.1} parent=1 // pred_check_branch
      %713 = sbr.rel (0) target = $region33
    $region32: #{encoder_lstm_forward.1} parent=1 // pred_region
      %715 = vsyncadd [#allocation5], 0
      %s717 = sshll.u32 [#allocation4], 4
      %s718 = int_to_ptr.vmem [resolvable:$true] %s717
      %s719 = sshll.u32 %s5, 4
      %s720 = int_to_ptr.hbm [resolvable:$true] %s719
      %722 = dma.vmem_to_hbm [thread:$0]  %s718, 32, %s720, [#allocation5]
    $region33: #{encoder_lstm_forward.1} parent=1 // pred_fallthru
      _
    // Predicated region
    $region34: #{encoder_lstm_forward.1} parent=1 // pred_check
      _
    $region35: #{encoder_lstm_forward.1} parent=1 // pred_check_branch
      %724 = sbr.rel (0) target = $region37
    $region36: #{encoder_lstm_forward.1} parent=1 // pred_region
      _
    $region37: #{encoder_lstm_forward.1} parent=1 // pred_fallthru
      _
    // Predicated region
    $region38: #{encoder_lstm_forward.1} parent=1 // pred_check
      _
    $region39: #{encoder_lstm_forward.1} parent=1 // pred_check_branch
      %726 = sbr.rel (0) target = $region41
    $region40: #{encoder_lstm_forward.1} parent=1 // pred_region
      _
    $region41: #{encoder_lstm_forward.1} parent=1 // pred_fallthru
      _
    // Predicated region
    $region42: #{encoder_lstm_forward.1} parent=1 // pred_check
      _
    $region43: #{encoder_lstm_forward.1} parent=1 // pred_check_branch
      %728 = sbr.rel (0) target = $region45
    $region44: #{encoder_lstm_forward.1} parent=1 // pred_region
      %730 = dma.done [#allocation5], 32
    $region45: #{encoder_lstm_forward.1} parent=1 // pred_fallthru
      _
    %731 = vsyncpa [#allocation5], 1

</llo_original>
